<compile_context>
chip_gen: v6e
topology: v6e:2x2x1
jax: 0.10.0
libtpu: 0.0.40
codegen_flags: <defaults>
</compile_context>

<pallas_src>
import functools

import jax
import jax.numpy as jnp
from jax.experimental import pallas as pl
from jax.experimental.pallas import tpu as pltpu

C_IN = 76
C_OUT = 1824


def _conv1x1_kernel(x_ref, w_ref, b_ref, o_ref):
    # x_ref: (M, K) f32   w_ref: (K, N) bf16   b_ref: (1, N) f32   o_ref: (M, N) f32
    x = x_ref[...].astype(w_ref.dtype)  # tiny cast (M*K elems) done in-kernel
    acc = jnp.dot(x, w_ref[...], preferred_element_type=jnp.float32)
    o_ref[...] = acc + b_ref[...]  # broadcast bias over rows


def prepare_conv_params(weight, bias, compute_dtype=jnp.bfloat16):
    """One-time parameter prep (outside the per-call path).

    weight: [C_out, C_in, 1, 1] -> (K=C_in, C_out) bf16 (no padding)
    bias:   [C_out]             -> (1, C_out) f32
    """
    c_out, c_in = weight.shape[0], weight.shape[1]
    w_prep = weight.reshape(c_out, c_in).T.astype(compute_dtype)          # (K, C_out)
    b_prep = bias.astype(jnp.float32).reshape(1, c_out)                   # (1, C_out)
    return w_prep, b_prep


@jax.jit
def conv2d_1x1(x_nchw, w_prep, b_prep):
    """1x1 conv, stride 1: y[n,o,h,w] = sum_c x[n,c,h,w] * W[o,c] + b[o]."""
    n, c, h, w = x_nchw.shape
    k, n_out = w_prep.shape
    assert c == k
    m = n * h * w

    # A 1x1/stride-1 conv is a per-pixel channel matmul: X[M=N*H*W, K=C_in].
    if h == 1 and w == 1:
        x_mat = x_nchw.reshape(m, c)                       # pure reshape, no transpose
    else:
        x_mat = jnp.transpose(x_nchw, (0, 2, 3, 1)).reshape(m, c)

    cost = pl.CostEstimate(
        flops=2 * m * k * n_out,
        bytes_accessed=(m * k * 4) + (k * n_out * 2) + (n_out * 4) + (m * n_out * 4),
        transcendentals=0,
    )

    out = pl.pallas_call(
        _conv1x1_kernel,
        out_shape=jax.ShapeDtypeStruct((m, n_out), jnp.float32),
        grid=(1,),  # single step: whole problem resident in VMEM
        in_specs=[
            pl.BlockSpec((m, k), lambda i: (0, 0)),      # X (full array, f32)
            pl.BlockSpec((k, n_out), lambda i: (0, 0)),  # W (full array, bf16) one burst
            pl.BlockSpec((1, n_out), lambda i: (0, 0)),  # bias (full array, f32)
        ],
        out_specs=pl.BlockSpec((m, n_out), lambda i: (0, 0)),
        compiler_params=pltpu.CompilerParams(
            dimension_semantics=("arbitrary",),
        ),
        cost_estimate=cost,
    )(x_mat, w_prep, b_prep)

    # TODO(synk): if reused with m >> 1 (real spatial extent / batch), add an M
    # grid axis (TM multiple of 8) so the resident X / f32 output blocks stay
    # within v7x's smaller VMEM.

    if h == 1 and w == 1:
        return out.reshape(n, n_out, 1, 1)                 # pure reshape back to NCHW
    return out.reshape(n, h, w, n_out).transpose(0, 3, 1, 2)


if __name__ == "__main__":
    key = jax.random.PRNGKey(0)
    kx, kw, kb = jax.random.split(key, 3)

    # Input consistent with the module: [1, 76, 1, 1]
    x647 = jax.random.normal(kx, (1, C_IN, 1, 1), dtype=jnp.float32)

    # Deterministic Conv2d(76, 1824, kernel_size=1) parameters
    bound = 1.0 / (float(C_IN) ** 0.5)
    weight = jax.random.uniform(kw, (C_OUT, C_IN, 1, 1), jnp.float32, -bound, bound)
    bias = jax.random.uniform(kb, (C_OUT,), jnp.float32, -bound, bound)

    # One-time parameter prep (hoisted out of the per-call path).
    w_prep, b_prep = prepare_conv_params(weight, bias)
    w_prep, b_prep = jax.block_until_ready((w_prep, b_prep))

    out = conv2d_1x1(x647, w_prep, b_prep)
    out = jax.block_until_ready(out)

    # Reference check in plain JAX (f32 reference; kernel uses bf16 weights
    # with f32 accumulation, so tolerance reflects bf16 quantization).
    ref = (
        jnp.einsum(
            "nchw,oc->nohw",
            x647,
            weight.reshape(C_OUT, C_IN),
            precision=jax.lax.Precision.HIGHEST,
        )
        + bias[None, :, None, None]
    )
    assert out.shape == (1, C_OUT, 1, 1), out.shape
    assert jnp.allclose(out, ref, atol=2e-2, rtol=2e-2), float(jnp.max(jnp.abs(out - ref)))

    print("KERNEL_OK")
</pallas_src>

<mosaic_0001>
module attributes {stable_mosaic.version = 11 : i64} {
  func.func @_conv1x1_kernel(%arg0: i32, %arg1: memref<1x76xf32, #tpu.memory_space<vmem>>, %arg2: memref<76x1824xbf16, #tpu.memory_space<vmem>>, %arg3: memref<1x1824xf32, #tpu.memory_space<vmem>>, %arg4: memref<1x1824xf32, #tpu.memory_space<vmem>>) attributes {dimension_semantics = [#tpu.dimension_semantics<arbitrary>], iteration_bounds = array<i64: 1>, scalar_prefetch = 0 : i64, scratch_operands = 0 : i64, tpu.core_type = #tpu.core_type<tc>, window_params = [{pipeline_mode = #tpu.pipeline_mode<synchronous>, transform_indices = @transform_0, window_bounds = array<i64: 1, 76>}, {pipeline_mode = #tpu.pipeline_mode<synchronous>, transform_indices = @transform_1, window_bounds = array<i64: 76, 1824>}, {pipeline_mode = #tpu.pipeline_mode<synchronous>, transform_indices = @transform_2, window_bounds = array<i64: 1, 1824>}, {pipeline_mode = #tpu.pipeline_mode<synchronous>, transform_indices = @transform_3, window_bounds = array<i64: 1, 1824>}]} {
    %c0 = arith.constant 0 : index
    %c0_0 = arith.constant 0 : index
    %0 = vector.load %arg1[%c0, %c0_0] : memref<1x76xf32, #tpu.memory_space<vmem>>, vector<1x76xf32>
    %1 = arith.truncf %0 : vector<1x76xf32> to vector<1x76xbf16>
    %c0_1 = arith.constant 0 : index
    %c0_2 = arith.constant 0 : index
    %2 = vector.load %arg2[%c0_1, %c0_2] : memref<76x1824xbf16, #tpu.memory_space<vmem>>, vector<76x1824xbf16>
    %cst = arith.constant dense<0.000000e+00> : vector<1x1824xf32>
    %3 = tpu.matmul %1, %2, %cst {dimension_numbers = #tpu.dot_dimension_numbers<[1], [0], [0], [1], [0, 0, 1, 1], [], []>} : vector<1x76xbf16>, vector<76x1824xbf16>, vector<1x1824xf32> -> vector<1x1824xf32>
    %c0_3 = arith.constant 0 : index
    %c0_4 = arith.constant 0 : index
    %4 = vector.load %arg3[%c0_3, %c0_4] : memref<1x1824xf32, #tpu.memory_space<vmem>>, vector<1x1824xf32>
    %5 = arith.addf %3, %4 : vector<1x1824xf32>
    %c0_5 = arith.constant 0 : index
    %c0_6 = arith.constant 0 : index
    %6 = vector.load %arg4[%c0_5, %c0_6] : memref<1x1824xf32, #tpu.memory_space<vmem>>, vector<1x1824xf32>
    tpu.vector_store %arg4[%c0_5, %c0_6], %5 {strides = array<i32>} : memref<1x1824xf32, #tpu.memory_space<vmem>>, vector<1x1824xf32>,
    return
  }
  func.func @transform_0(%arg0: i32) -> (i32, i32) {
    %c0_i32 = arith.constant 0 : i32
    %c0_i32_0 = arith.constant 0 : i32
    %c0_i32_1 = arith.constant 0 : i32
    return %c0_i32, %c0_i32_0 : i32, i32
  }
  func.func @transform_1(%arg0: i32) -> (i32, i32) {
    %c0_i32 = arith.constant 0 : i32
    %c0_i32_0 = arith.constant 0 : i32
    %c0_i32_1 = arith.constant 0 : i32
    return %c0_i32, %c0_i32_0 : i32, i32
  }
  func.func @transform_2(%arg0: i32) -> (i32, i32) {
    %c0_i32 = arith.constant 0 : i32
    %c0_i32_0 = arith.constant 0 : i32
    %c0_i32_1 = arith.constant 0 : i32
    return %c0_i32, %c0_i32_0 : i32, i32
  }
  func.func @transform_3(%arg0: i32) -> (i32, i32) {
    %c0_i32 = arith.constant 0 : i32
    %c0_i32_0 = arith.constant 0 : i32
    %c0_i32_1 = arith.constant 0 : i32
    return %c0_i32, %c0_i32_0 : i32, i32
  }
}

</mosaic_0001>

<llo_original>
// kernel: conv2d_1x1.1
$region0: #{conv2d_1x1.1}
  #allocation0 [shape = 'u32[]', space=smem, size = 0x4, offset = 0x4, fixed_abs, tag = 'smem constant byte address 0x4 - core index']
  #allocation1 [shape = 'u32[144,128]{1,0:T(1,128)}', space=vmem, size = 0x12000, scoped, tag = 'internal scratch']
  %s0 = inlined_call_operand.vmem [shape: f32[1,76], index: 0, kind: input, shape index: {}]
  %s1 = inlined_call_operand.hbm [shape: bf16[76,1824], index: 1, kind: input, shape index: {}]
  %s2 = inlined_call_operand.hbm [shape: f32[1,1824], index: 2, kind: input, shape index: {}]
  %s3 = inlined_call_operand.hbm [shape: f32[1,1824], index: 3, kind: output, shape index: {}]
  %s4 = sld [smem:[#allocation0]]
  $region30: #{conv2d_1x1.1} parent=0
    _
  %s6 = ssub.s32 1, %s4
  %s7 = scalar_select 0, %s6, %s4
  $region1: #{conv2d_1x1.1} parent=0
    #allocation2 [shape = 'u8[307200]{0}', space=vmem, size = 0x4b000, scoped, tag = 'input window, operand 1, single buffered']
    #allocation3 [shape = 's32[1]{0}', space=sflag, size = 0x4, scoped, tag = 'scoped memory for conv2d_1x1.1']
    #allocation4 [shape = 's32[1]{0}', space=sflag, size = 0x4, scoped, tag = 'scoped memory for conv2d_1x1.1']
    #allocation5 [shape = 'u8[7680]{0}', space=vmem, size = 0x2000, scoped, tag = 'input window, operand 2, single buffered']
    #allocation6 [shape = 's32[1]{0}', space=sflag, size = 0x4, scoped, tag = 'scoped memory for conv2d_1x1.1']
    #allocation7 [shape = 'u8[7680]{0}', space=vmem, size = 0x2000, scoped, tag = 'output window, operand 0, single buffered']
    %8 = vsyncpa [#allocation3], 0
    %9 = vsyncpa [#allocation6], 0
    %10 = vsyncpa [#allocation4], 0
    // Predicated region
    $region2: #{conv2d_1x1.1} parent=1 // pred_check
      _
    $region3: #{conv2d_1x1.1} parent=1 // pred_check_branch
      %12 = sbr.rel (0) target = $region5
    $region4: #{conv2d_1x1.1} parent=1 // pred_region
      _
    $region5: #{conv2d_1x1.1} parent=1 // pred_fallthru
      _
    // Predicated region
    $region6: #{conv2d_1x1.1} parent=1 // pred_check
      _
    $region7: #{conv2d_1x1.1} parent=1 // pred_check_branch
      %14 = sbr.rel (0) target = $region9
    $region8: #{conv2d_1x1.1} parent=1 // pred_region
      %s16 = ssub.s32 9600, 9600
      %17 = vsyncadd [#allocation3], %s16
      %s18 = sshll.u32 [#allocation2], 4
      %s19 = int_to_ptr.vmem [resolvable:$true] %s18
      %24 = dma.hbm_to_vmem [thread:$0]  %s1, 9600, %s19, [#allocation3], 960, 960, 60
    $region9: #{conv2d_1x1.1} parent=1 // pred_fallthru
      _
    // Predicated region
    $region10: #{conv2d_1x1.1} parent=1 // pred_check
      _
    $region11: #{conv2d_1x1.1} parent=1 // pred_check_branch
      %26 = sbr.rel (0) target = $region13
    $region12: #{conv2d_1x1.1} parent=1 // pred_region
      %s28 = ssub.s32 240, 240
      %29 = vsyncadd [#allocation6], %s28
      %s31 = sshll.u32 [#allocation5], 4
      %s32 = int_to_ptr.vmem [resolvable:$true] %s31
      %34 = dma.hbm_to_vmem [thread:$0]  %s2, 240, %s32, [#allocation6]
    $region13: #{conv2d_1x1.1} parent=1 // pred_fallthru
      _
    // Predicated region
    $region14: #{conv2d_1x1.1} parent=1 // pred_check
      _
    $region15: #{conv2d_1x1.1} parent=1 // pred_check_branch
      %36 = sbr.rel (0) target = $region17
    $region16: #{conv2d_1x1.1} parent=1 // pred_region
      %37 = dma.done [#allocation3], 9600
    $region17: #{conv2d_1x1.1} parent=1 // pred_fallthru
      _
    // Predicated region
    $region18: #{conv2d_1x1.1} parent=1 // pred_check
      _
    $region19: #{conv2d_1x1.1} parent=1 // pred_check_branch
      %39 = sbr.rel (0) target = $region21
    $region20: #{conv2d_1x1.1} parent=1 // pred_region
      %40 = dma.done [#allocation6], 240
    $region21: #{conv2d_1x1.1} parent=1 // pred_fallthru
      _
    %v42 = vld [vmem:[%s0] sm:$0x1]
    %v43 = vpack.c.bf16 %v42, %v42
    %v44 = vld [vmem:[#allocation2] sm:$0xff]
    %v45 = vld [vmem:[#allocation2 + $0x8] sm:$0xff]
    %v46 = vld [vmem:[#allocation2 + $0x10] sm:$0xff]
    %v47 = vld [vmem:[#allocation2 + $0x18] sm:$0xff]
    %v48 = vld [vmem:[#allocation2 + $0x20] sm:$0xff]
    %v49 = vld [vmem:[#allocation2 + $0x28] sm:$0xff]
    %v50 = vld [vmem:[#allocation2 + $0x30] sm:$0xff]
    %v51 = vld [vmem:[#allocation2 + $0x38] sm:$0xf]
    %v52 = vld [vmem:[#allocation2 + $0x3c] sm:$0xff]
    %v53 = vld [vmem:[#allocation2 + $0x44] sm:$0xff]
    %v54 = vld [vmem:[#allocation2 + $0x4c] sm:$0xff]
    %v55 = vld [vmem:[#allocation2 + $0x54] sm:$0xff]
    %v56 = vld [vmem:[#allocation2 + $0x5c] sm:$0xff]
    %v57 = vld [vmem:[#allocation2 + $0x64] sm:$0xff]
    %v58 = vld [vmem:[#allocation2 + $0x6c] sm:$0xff]
    %v59 = vld [vmem:[#allocation2 + $0x74] sm:$0xf]
    %v60 = vld [vmem:[#allocation2 + $0x78] sm:$0xff]
    %v61 = vld [vmem:[#allocation2 + $0x80] sm:$0xff]
    %v62 = vld [vmem:[#allocation2 + $0x88] sm:$0xff]
    %v63 = vld [vmem:[#allocation2 + $0x90] sm:$0xff]
    %v64 = vld [vmem:[#allocation2 + $0x98] sm:$0xff]
    %v65 = vld [vmem:[#allocation2 + $0xa0] sm:$0xff]
    %v66 = vld [vmem:[#allocation2 + $0xa8] sm:$0xff]
    %v67 = vld [vmem:[#allocation2 + $0xb0] sm:$0xf]
    %v68 = vld [vmem:[#allocation2 + $0xb4] sm:$0xff]
    %v69 = vld [vmem:[#allocation2 + $0xbc] sm:$0xff]
    %v70 = vld [vmem:[#allocation2 + $0xc4] sm:$0xff]
    %v71 = vld [vmem:[#allocation2 + $0xcc] sm:$0xff]
    %v72 = vld [vmem:[#allocation2 + $0xd4] sm:$0xff]
    %v73 = vld [vmem:[#allocation2 + $0xdc] sm:$0xff]
    %v74 = vld [vmem:[#allocation2 + $0xe4] sm:$0xff]
    %v75 = vld [vmem:[#allocation2 + $0xec] sm:$0xf]
    %v76 = vld [vmem:[#allocation2 + $0xf0] sm:$0xff]
    %v77 = vld [vmem:[#allocation2 + $0xf8] sm:$0xff]
    %v78 = vld [vmem:[#allocation2 + $0x100] sm:$0xff]
    %v79 = vld [vmem:[#allocation2 + $0x108] sm:$0xff]
    %v80 = vld [vmem:[#allocation2 + $0x110] sm:$0xff]
    %v81 = vld [vmem:[#allocation2 + $0x118] sm:$0xff]
    %v82 = vld [vmem:[#allocation2 + $0x120] sm:$0xff]
    %v83 = vld [vmem:[#allocation2 + $0x128] sm:$0xf]
    %v84 = vld [vmem:[#allocation2 + $0x12c] sm:$0xff]
    %v85 = vld [vmem:[#allocation2 + $0x134] sm:$0xff]
    %v86 = vld [vmem:[#allocation2 + $0x13c] sm:$0xff]
    %v87 = vld [vmem:[#allocation2 + $0x144] sm:$0xff]
    %v88 = vld [vmem:[#allocation2 + $0x14c] sm:$0xff]
    %v89 = vld [vmem:[#allocation2 + $0x154] sm:$0xff]
    %v90 = vld [vmem:[#allocation2 + $0x15c] sm:$0xff]
    %v91 = vld [vmem:[#allocation2 + $0x164] sm:$0xf]
    %v92 = vld [vmem:[#allocation2 + $0x168] sm:$0xff]
    %v93 = vld [vmem:[#allocation2 + $0x170] sm:$0xff]
    %v94 = vld [vmem:[#allocation2 + $0x178] sm:$0xff]
    %v95 = vld [vmem:[#allocation2 + $0x180] sm:$0xff]
    %v96 = vld [vmem:[#allocation2 + $0x188] sm:$0xff]
    %v97 = vld [vmem:[#allocation2 + $0x190] sm:$0xff]
    %v98 = vld [vmem:[#allocation2 + $0x198] sm:$0xff]
    %v99 = vld [vmem:[#allocation2 + $0x1a0] sm:$0xf]
    %v100 = vld [vmem:[#allocation2 + $0x1a4] sm:$0xff]
    %v101 = vld [vmem:[#allocation2 + $0x1ac] sm:$0xff]
    %v102 = vld [vmem:[#allocation2 + $0x1b4] sm:$0xff]
    %v103 = vld [vmem:[#allocation2 + $0x1bc] sm:$0xff]
    %v104 = vld [vmem:[#allocation2 + $0x1c4] sm:$0xff]
    %v105 = vld [vmem:[#allocation2 + $0x1cc] sm:$0xff]
    %v106 = vld [vmem:[#allocation2 + $0x1d4] sm:$0xff]
    %v107 = vld [vmem:[#allocation2 + $0x1dc] sm:$0xf]
    %v108 = vld [vmem:[#allocation2 + $0x1e0] sm:$0xff]
    %v109 = vld [vmem:[#allocation2 + $0x1e8] sm:$0xff]
    %v110 = vld [vmem:[#allocation2 + $0x1f0] sm:$0xff]
    %v111 = vld [vmem:[#allocation2 + $0x1f8] sm:$0xff]
    %v112 = vld [vmem:[#allocation2 + $0x200] sm:$0xff]
    %v113 = vld [vmem:[#allocation2 + $0x208] sm:$0xff]
    %v114 = vld [vmem:[#allocation2 + $0x210] sm:$0xff]
    %v115 = vld [vmem:[#allocation2 + $0x218] sm:$0xf]
    %v116 = vld [vmem:[#allocation2 + $0x21c] sm:$0x33]
    %v117 = vld [vmem:[#allocation2 + $0x224] sm:$0x33]
    %v118 = vld [vmem:[#allocation2 + $0x22c] sm:$0x33]
    %v119 = vld [vmem:[#allocation2 + $0x234] sm:$0x33]
    %v120 = vld [vmem:[#allocation2 + $0x23c] sm:$0x33]
    %v121 = vld [vmem:[#allocation2 + $0x244] sm:$0x33]
    %v122 = vld [vmem:[#allocation2 + $0x24c] sm:$0x33]
    %v123 = vld [vmem:[#allocation2 + $0x254] sm:$0x3]
    %v124 = vld [vmem:[#allocation5] sm:$0xff]
    %v125 = vld [vmem:[#allocation5 + $0x8] sm:$0x7f]
    %v206 = vunpack.c.l.b16 %v44
    %v207 = vunpack.c.h.b16 %v44
    %v208 = vunpack.c.l.b16 %v45
    %v209 = vunpack.c.h.b16 %v45
    %v210 = vunpack.c.l.b16 %v46
    %v211 = vunpack.c.h.b16 %v46
    %v212 = vunpack.c.l.b16 %v47
    %v213 = vunpack.c.h.b16 %v47
    %v214 = vunpack.c.l.b16 %v48
    %v215 = vunpack.c.h.b16 %v48
    %v216 = vunpack.c.l.b16 %v49
    %v217 = vunpack.c.h.b16 %v49
    %v218 = vunpack.c.l.b16 %v50
    %v219 = vunpack.c.h.b16 %v50
    %v220 = vunpack.c.l.b16 %v51
    %v221 = vunpack.c.l.b16 %v52
    %v222 = vunpack.c.h.b16 %v52
    %v223 = vunpack.c.l.b16 %v53
    %v224 = vunpack.c.h.b16 %v53
    %v225 = vunpack.c.l.b16 %v54
    %v226 = vunpack.c.h.b16 %v54
    %v227 = vunpack.c.l.b16 %v55
    %v228 = vunpack.c.h.b16 %v55
    %v229 = vunpack.c.l.b16 %v56
    %v230 = vunpack.c.h.b16 %v56
    %v231 = vunpack.c.l.b16 %v57
    %v232 = vunpack.c.h.b16 %v57
    %v233 = vunpack.c.l.b16 %v58
    %v234 = vunpack.c.h.b16 %v58
    %v235 = vunpack.c.l.b16 %v59
    %v236 = vunpack.c.l.b16 %v60
    %v237 = vunpack.c.h.b16 %v60
    %v238 = vunpack.c.l.b16 %v61
    %v239 = vunpack.c.h.b16 %v61
    %v240 = vunpack.c.l.b16 %v62
    %v241 = vunpack.c.h.b16 %v62
    %v242 = vunpack.c.l.b16 %v63
    %v243 = vunpack.c.h.b16 %v63
    %v244 = vunpack.c.l.b16 %v64
    %v245 = vunpack.c.h.b16 %v64
    %v246 = vunpack.c.l.b16 %v65
    %v247 = vunpack.c.h.b16 %v65
    %v248 = vunpack.c.l.b16 %v66
    %v249 = vunpack.c.h.b16 %v66
    %v250 = vunpack.c.l.b16 %v67
    %v251 = vunpack.c.l.b16 %v68
    %v252 = vunpack.c.h.b16 %v68
    %v253 = vunpack.c.l.b16 %v69
    %v254 = vunpack.c.h.b16 %v69
    %v255 = vunpack.c.l.b16 %v70
    %v256 = vunpack.c.h.b16 %v70
    %v257 = vunpack.c.l.b16 %v71
    %v258 = vunpack.c.h.b16 %v71
    %v259 = vunpack.c.l.b16 %v72
    %v260 = vunpack.c.h.b16 %v72
    %v261 = vunpack.c.l.b16 %v73
    %v262 = vunpack.c.h.b16 %v73
    %v263 = vunpack.c.l.b16 %v74
    %v264 = vunpack.c.h.b16 %v74
    %v265 = vunpack.c.l.b16 %v75
    %v266 = vunpack.c.l.b16 %v76
    %v267 = vunpack.c.h.b16 %v76
    %v268 = vunpack.c.l.b16 %v77
    %v269 = vunpack.c.h.b16 %v77
    %v270 = vunpack.c.l.b16 %v78
    %v271 = vunpack.c.h.b16 %v78
    %v272 = vunpack.c.l.b16 %v79
    %v273 = vunpack.c.h.b16 %v79
    %v274 = vunpack.c.l.b16 %v80
    %v275 = vunpack.c.h.b16 %v80
    %v276 = vunpack.c.l.b16 %v81
    %v277 = vunpack.c.h.b16 %v81
    %v278 = vunpack.c.l.b16 %v82
    %v279 = vunpack.c.h.b16 %v82
    %v280 = vunpack.c.l.b16 %v83
    %v281 = vunpack.c.l.b16 %v84
    %v282 = vunpack.c.h.b16 %v84
    %v283 = vunpack.c.l.b16 %v85
    %v284 = vunpack.c.h.b16 %v85
    %v285 = vunpack.c.l.b16 %v86
    %v286 = vunpack.c.h.b16 %v86
    %v287 = vunpack.c.l.b16 %v87
    %v288 = vunpack.c.h.b16 %v87
    %v289 = vunpack.c.l.b16 %v88
    %v290 = vunpack.c.h.b16 %v88
    %v291 = vunpack.c.l.b16 %v89
    %v292 = vunpack.c.h.b16 %v89
    %v293 = vunpack.c.l.b16 %v90
    %v294 = vunpack.c.h.b16 %v90
    %v295 = vunpack.c.l.b16 %v91
    %v296 = vunpack.c.l.b16 %v92
    %v297 = vunpack.c.h.b16 %v92
    %v298 = vunpack.c.l.b16 %v93
    %v299 = vunpack.c.h.b16 %v93
    %v300 = vunpack.c.l.b16 %v94
    %v301 = vunpack.c.h.b16 %v94
    %v302 = vunpack.c.l.b16 %v95
    %v303 = vunpack.c.h.b16 %v95
    %v304 = vunpack.c.l.b16 %v96
    %v305 = vunpack.c.h.b16 %v96
    %v306 = vunpack.c.l.b16 %v97
    %v307 = vunpack.c.h.b16 %v97
    %v308 = vunpack.c.l.b16 %v98
    %v309 = vunpack.c.h.b16 %v98
    %v310 = vunpack.c.l.b16 %v99
    %v311 = vunpack.c.l.b16 %v100
    %v312 = vunpack.c.h.b16 %v100
    %v313 = vunpack.c.l.b16 %v101
    %v314 = vunpack.c.h.b16 %v101
    %v315 = vunpack.c.l.b16 %v102
    %v316 = vunpack.c.h.b16 %v102
    %v317 = vunpack.c.l.b16 %v103
    %v318 = vunpack.c.h.b16 %v103
    %v319 = vunpack.c.l.b16 %v104
    %v320 = vunpack.c.h.b16 %v104
    %v321 = vunpack.c.l.b16 %v105
    %v322 = vunpack.c.h.b16 %v105
    %v323 = vunpack.c.l.b16 %v106
    %v324 = vunpack.c.h.b16 %v106
    %v325 = vunpack.c.l.b16 %v107
    %v326 = vunpack.c.l.b16 %v108
    %v327 = vunpack.c.h.b16 %v108
    %v328 = vunpack.c.l.b16 %v109
    %v329 = vunpack.c.h.b16 %v109
    %v330 = vunpack.c.l.b16 %v110
    %v331 = vunpack.c.h.b16 %v110
    %v332 = vunpack.c.l.b16 %v111
    %v333 = vunpack.c.h.b16 %v111
    %v334 = vunpack.c.l.b16 %v112
    %v335 = vunpack.c.h.b16 %v112
    %v336 = vunpack.c.l.b16 %v113
    %v337 = vunpack.c.h.b16 %v113
    %v338 = vunpack.c.l.b16 %v114
    %v339 = vunpack.c.h.b16 %v114
    %v340 = vunpack.c.l.b16 %v115
    %v341 = vunpack.c.l.b16 %v116
    %v342 = vunpack.c.h.b16 %v116
    %v343 = vunpack.c.l.b16 %v117
    %v344 = vunpack.c.h.b16 %v117
    %v345 = vunpack.c.l.b16 %v118
    %v346 = vunpack.c.h.b16 %v118
    %v347 = vunpack.c.l.b16 %v119
    %v348 = vunpack.c.h.b16 %v119
    %v349 = vunpack.c.l.b16 %v120
    %v350 = vunpack.c.h.b16 %v120
    %v351 = vunpack.c.l.b16 %v121
    %v352 = vunpack.c.h.b16 %v121
    %v353 = vunpack.c.l.b16 %v122
    %v354 = vunpack.c.h.b16 %v122
    %v355 = vunpack.c.l.b16 %v123
    %v356 = vpack.c.b16 %v221, %v206
    %v357 = vpack.c.b16 %v222, %v207
    %v358 = vpack.c.b16 %v223, %v208
    %v359 = vpack.c.b16 %v224, %v209
    %v360 = vpack.c.b16 %v225, %v210
    %v361 = vpack.c.b16 %v226, %v211
    %v362 = vpack.c.b16 %v227, %v212
    %v363 = vpack.c.b16 %v228, %v213
    %v364 = vpack.c.b16 %v229, %v214
    %v365 = vpack.c.b16 %v230, %v215
    %v366 = vpack.c.b16 %v231, %v216
    %v367 = vpack.c.b16 %v232, %v217
    %v368 = vpack.c.b16 %v233, %v218
    %v369 = vpack.c.b16 %v234, %v219
    %v370 = vpack.c.b16 %v235, %v220
    %v371 = vpack.c.b16 %v251, %v236
    %v372 = vpack.c.b16 %v252, %v237
    %v373 = vpack.c.b16 %v253, %v238
    %v374 = vpack.c.b16 %v254, %v239
    %v375 = vpack.c.b16 %v255, %v240
    %v376 = vpack.c.b16 %v256, %v241
    %v377 = vpack.c.b16 %v257, %v242
    %v378 = vpack.c.b16 %v258, %v243
    %v379 = vpack.c.b16 %v259, %v244
    %v380 = vpack.c.b16 %v260, %v245
    %v381 = vpack.c.b16 %v261, %v246
    %v382 = vpack.c.b16 %v262, %v247
    %v383 = vpack.c.b16 %v263, %v248
    %v384 = vpack.c.b16 %v264, %v249
    %v385 = vpack.c.b16 %v265, %v250
    %v386 = vpack.c.b16 %v281, %v266
    %v387 = vpack.c.b16 %v282, %v267
    %v388 = vpack.c.b16 %v283, %v268
    %v389 = vpack.c.b16 %v284, %v269
    %v390 = vpack.c.b16 %v285, %v270
    %v391 = vpack.c.b16 %v286, %v271
    %v392 = vpack.c.b16 %v287, %v272
    %v393 = vpack.c.b16 %v288, %v273
    %v394 = vpack.c.b16 %v289, %v274
    %v395 = vpack.c.b16 %v290, %v275
    %v396 = vpack.c.b16 %v291, %v276
    %v397 = vpack.c.b16 %v292, %v277
    %v398 = vpack.c.b16 %v293, %v278
    %v399 = vpack.c.b16 %v294, %v279
    %v400 = vpack.c.b16 %v295, %v280
    %v401 = vpack.c.b16 %v311, %v296
    %v402 = vpack.c.b16 %v312, %v297
    %v403 = vpack.c.b16 %v313, %v298
    %v404 = vpack.c.b16 %v314, %v299
    %v405 = vpack.c.b16 %v315, %v300
    %v406 = vpack.c.b16 %v316, %v301
    %v407 = vpack.c.b16 %v317, %v302
    %v408 = vpack.c.b16 %v318, %v303
    %v409 = vpack.c.b16 %v319, %v304
    %v410 = vpack.c.b16 %v320, %v305
    %v411 = vpack.c.b16 %v321, %v306
    %v412 = vpack.c.b16 %v322, %v307
    %v413 = vpack.c.b16 %v323, %v308
    %v414 = vpack.c.b16 %v324, %v309
    %v415 = vpack.c.b16 %v325, %v310
    %v416 = vpack.c.b16 %v341, %v326
    %v417 = vpack.c.b16 %v342, %v327
    %v418 = vpack.c.b16 %v343, %v328
    %v419 = vpack.c.b16 %v344, %v329
    %v420 = vpack.c.b16 %v345, %v330
    %v421 = vpack.c.b16 %v346, %v331
    %v422 = vpack.c.b16 %v347, %v332
    %v423 = vpack.c.b16 %v348, %v333
    %v424 = vpack.c.b16 %v349, %v334
    %v425 = vpack.c.b16 %v350, %v335
    %v426 = vpack.c.b16 %v351, %v336
    %v427 = vpack.c.b16 %v352, %v337
    %v428 = vpack.c.b16 %v353, %v338
    %v429 = vpack.c.b16 %v354, %v339
    %v430 = vpack.c.b16 %v355, %v340
    %v493 = vlaneseq
    %v494 = vshrl.u32 %v493, 7
    %v495 = vsub.s32 0, %v494
    %v496 = vrot.slane %v124, %v495
    %v497 = vlaneseq
    %v498 = vshrl.u32 %v497, 7
    %v499 = vsub.s32 1, %v498
    %v500 = vrot.slane %v124, %v499
    %v501 = vlaneseq
    %v502 = vshrl.u32 %v501, 7
    %v503 = vsub.s32 2, %v502
    %v504 = vrot.slane %v124, %v503
    %v505 = vlaneseq
    %v506 = vshrl.u32 %v505, 7
    %v507 = vsub.s32 3, %v506
    %v508 = vrot.slane %v124, %v507
    %v509 = vlaneseq
    %v510 = vshrl.u32 %v509, 7
    %v511 = vsub.s32 4, %v510
    %v512 = vrot.slane %v124, %v511
    %v513 = vlaneseq
    %v514 = vshrl.u32 %v513, 7
    %v515 = vsub.s32 5, %v514
    %v516 = vrot.slane %v124, %v515
    %v517 = vlaneseq
    %v518 = vshrl.u32 %v517, 7
    %v519 = vsub.s32 6, %v518
    %v520 = vrot.slane %v124, %v519
    %v521 = vlaneseq
    %v522 = vshrl.u32 %v521, 7
    %v523 = vsub.s32 7, %v522
    %v524 = vrot.slane %v124, %v523
    %v525 = vlaneseq
    %v526 = vshrl.u32 %v525, 7
    %v527 = vsub.s32 0, %v526
    %v528 = vrot.slane %v125, %v527
    %v529 = vlaneseq
    %v530 = vshrl.u32 %v529, 7
    %v531 = vsub.s32 1, %v530
    %v532 = vrot.slane %v125, %v531
    %v533 = vlaneseq
    %v534 = vshrl.u32 %v533, 7
    %v535 = vsub.s32 2, %v534
    %v536 = vrot.slane %v125, %v535
    %v537 = vlaneseq
    %v538 = vshrl.u32 %v537, 7
    %v539 = vsub.s32 3, %v538
    %v540 = vrot.slane %v125, %v539
    %v541 = vlaneseq
    %v542 = vshrl.u32 %v541, 7
    %v543 = vsub.s32 4, %v542
    %v544 = vrot.slane %v125, %v543
    %v545 = vlaneseq
    %v546 = vshrl.u32 %v545, 7
    %v547 = vsub.s32 5, %v546
    %v548 = vrot.slane %v125, %v547
    %v549 = vlaneseq
    %v550 = vshrl.u32 %v549, 7
    %v551 = vsub.s32 6, %v550
    %v552 = vrot.slane %v125, %v551
    %vm568 = vcmask 621568
    %v570 = vsel %vm568, %v43, 0
    %vm572 = vcmask 1045504
    %v574 = vsel %vm572, %v416, 0
    %v577 = vsel %vm572, %v417, 0
    %v580 = vsel %vm572, %v418, 0
    %v583 = vsel %vm572, %v419, 0
    %v586 = vsel %vm572, %v420, 0
    %v589 = vsel %vm572, %v421, 0
    %v592 = vsel %vm572, %v422, 0
    %v595 = vsel %vm572, %v423, 0
    %v598 = vsel %vm572, %v424, 0
    %v601 = vsel %vm572, %v425, 0
    %v604 = vsel %vm572, %v426, 0
    %v607 = vsel %vm572, %v427, 0
    %v610 = vsel %vm572, %v428, 0
    %v613 = vsel %vm572, %v429, 0
    %v616 = vsel %vm572, %v430, 0
    %618 = vmatprep.subr.bf16.mxu0 0
    %619 = vmatpush1.bf16.msra.mxu0 0
    %620 = vmatprep.subr.bf16.mxu0 0
    %621 = vmatpush1.bf16.msra.mxu0 0
    %622 = vmatprep.subr.bf16.mxu0 0
    %623 = vmatpush1.bf16.msra.mxu0 0
    %624 = vmatprep.subr.bf16.mxu0 %v577
    %625 = vmatpush1.bf16.msra.mxu0 %v574
    %626 = vmatprep.subr.bf16.mxu0 %v402
    %627 = vmatpush1.bf16.msra.mxu0 %v401
    %628 = vmatprep.subr.bf16.mxu0 %v387
    %629 = vmatpush1.bf16.msra.mxu0 %v386
    %630 = vmatprep.subr.bf16.mxu0 %v372
    %631 = vmatpush1.bf16.msra.mxu0 %v371
    %632 = vmatprep.subr.bf16.mxu0 %v357
    %633 = vmatpush1.bf16.msra.mxu0 %v356
    %634 = vmatprep.subr.bf16.mxu0 0
    %635 = vmatpush2.bf16.msra.mxu0 0
    %636 = vmatprep.subr.bf16.mxu0 0
    %637 = vmatpush2.bf16.msra.mxu0 0
    %638 = vmatprep.subr.bf16.mxu0 0
    %639 = vmatpush2.bf16.msra.mxu0 0
    %640 = vmatprep.subr.bf16.mxu0 0
    %641 = vmatpush2.bf16.msra.mxu0 0
    %642 = vmatprep.subr.bf16.mxu0 0
    %643 = vmatpush2.bf16.msra.mxu0 0
    %644 = vmatprep.subr.bf16.mxu0 0
    %645 = vmatpush2.bf16.msra.mxu0 0
    %646 = vmatprep.subr.bf16.mxu0 0
    %647 = vmatpush2.bf16.msra.mxu0 0
    %648 = vmatprep.subr.bf16.mxu0 0
    %649 = vmatpush2.bf16.msra.mxu0 0
    %650 = vmatprep.mubr.bf16.mxu0 0
    %651 = vmatmul.mubr.bf16.gmra.mxu0 %v570
    %v652 = vpop.f32.mrf.mxu0
    %v653 = vadd.f32 %v496, %v652
    %v654 = vpop.f32.mrf.mxu0
    %v655 = vadd.f32 %v500, %v654
    %v656 = vpop.f32.mrf.mxu0
    %v657 = vpop.f32.mrf.mxu0
    %658 = vdwg.mxu0
    %659 = vmatprep.subr.bf16.mxu0 0
    %660 = vmatpush1.bf16.msra.mxu0 0
    %661 = vmatprep.subr.bf16.mxu0 0
    %662 = vmatpush1.bf16.msra.mxu0 0
    %663 = vmatprep.subr.bf16.mxu0 0
    %664 = vmatpush1.bf16.msra.mxu0 0
    %665 = vmatprep.subr.bf16.mxu0 %v583
    %666 = vmatpush1.bf16.msra.mxu0 %v580
    %667 = vmatprep.subr.bf16.mxu0 %v404
    %668 = vmatpush1.bf16.msra.mxu0 %v403
    %669 = vmatprep.subr.bf16.mxu0 %v389
    %670 = vmatpush1.bf16.msra.mxu0 %v388
    %671 = vmatprep.subr.bf16.mxu0 %v374
    %672 = vmatpush1.bf16.msra.mxu0 %v373
    %673 = vmatprep.subr.bf16.mxu0 %v359
    %674 = vmatpush1.bf16.msra.mxu0 %v358
    %675 = vmatprep.subr.bf16.mxu0 0
    %676 = vmatpush2.bf16.msra.mxu0 0
    %677 = vmatprep.subr.bf16.mxu0 0
    %678 = vmatpush2.bf16.msra.mxu0 0
    %679 = vmatprep.subr.bf16.mxu0 0
    %680 = vmatpush2.bf16.msra.mxu0 0
    %681 = vmatprep.subr.bf16.mxu0 0
    %682 = vmatpush2.bf16.msra.mxu0 0
    %683 = vmatprep.subr.bf16.mxu0 0
    %684 = vmatpush2.bf16.msra.mxu0 0
    %685 = vmatprep.subr.bf16.mxu0 0
    %686 = vmatpush2.bf16.msra.mxu0 0
    %687 = vmatprep.subr.bf16.mxu0 0
    %688 = vmatpush2.bf16.msra.mxu0 0
    %689 = vmatprep.subr.bf16.mxu0 0
    %690 = vmatpush2.bf16.msra.mxu0 0
    %691 = vmatprep.mubr.bf16.mxu0 0
    %692 = vmatmul.mubr.bf16.gmra.mxu0 %v570
    %v693 = vpop.f32.mrf.mxu0
    %v694 = vadd.f32 %v504, %v693
    %v695 = vpop.f32.mrf.mxu0
    %v696 = vadd.f32 %v508, %v695
    %v697 = vpop.f32.mrf.mxu0
    %v698 = vpop.f32.mrf.mxu0
    %699 = vdwg.mxu0
    %700 = vmatprep.subr.bf16.mxu0 0
    %701 = vmatpush1.bf16.msra.mxu0 0
    %702 = vmatprep.subr.bf16.mxu0 0
    %703 = vmatpush1.bf16.msra.mxu0 0
    %704 = vmatprep.subr.bf16.mxu0 0
    %705 = vmatpush1.bf16.msra.mxu0 0
    %706 = vmatprep.subr.bf16.mxu0 %v589
    %707 = vmatpush1.bf16.msra.mxu0 %v586
    %708 = vmatprep.subr.bf16.mxu0 %v406
    %709 = vmatpush1.bf16.msra.mxu0 %v405
    %710 = vmatprep.subr.bf16.mxu0 %v391
    %711 = vmatpush1.bf16.msra.mxu0 %v390
    %712 = vmatprep.subr.bf16.mxu0 %v376
    %713 = vmatpush1.bf16.msra.mxu0 %v375
    %714 = vmatprep.subr.bf16.mxu0 %v361
    %715 = vmatpush1.bf16.msra.mxu0 %v360
    %716 = vmatprep.subr.bf16.mxu0 0
    %717 = vmatpush2.bf16.msra.mxu0 0
    %718 = vmatprep.subr.bf16.mxu0 0
    %719 = vmatpush2.bf16.msra.mxu0 0
    %720 = vmatprep.subr.bf16.mxu0 0
    %721 = vmatpush2.bf16.msra.mxu0 0
    %722 = vmatprep.subr.bf16.mxu0 0
    %723 = vmatpush2.bf16.msra.mxu0 0
    %724 = vmatprep.subr.bf16.mxu0 0
    %725 = vmatpush2.bf16.msra.mxu0 0
    %726 = vmatprep.subr.bf16.mxu0 0
    %727 = vmatpush2.bf16.msra.mxu0 0
    %728 = vmatprep.subr.bf16.mxu0 0
    %729 = vmatpush2.bf16.msra.mxu0 0
    %730 = vmatprep.subr.bf16.mxu0 0
    %731 = vmatpush2.bf16.msra.mxu0 0
    %732 = vmatprep.mubr.bf16.mxu0 0
    %733 = vmatmul.mubr.bf16.gmra.mxu0 %v570
    %v734 = vpop.f32.mrf.mxu0
    %v735 = vadd.f32 %v512, %v734
    %v736 = vpop.f32.mrf.mxu0
    %v737 = vadd.f32 %v516, %v736
    %v738 = vpop.f32.mrf.mxu0
    %v739 = vpop.f32.mrf.mxu0
    %740 = vdwg.mxu0
    %741 = vmatprep.subr.bf16.mxu0 0
    %742 = vmatpush1.bf16.msra.mxu0 0
    %743 = vmatprep.subr.bf16.mxu0 0
    %744 = vmatpush1.bf16.msra.mxu0 0
    %745 = vmatprep.subr.bf16.mxu0 0
    %746 = vmatpush1.bf16.msra.mxu0 0
    %747 = vmatprep.subr.bf16.mxu0 %v595
    %748 = vmatpush1.bf16.msra.mxu0 %v592
    %749 = vmatprep.subr.bf16.mxu0 %v408
    %750 = vmatpush1.bf16.msra.mxu0 %v407
    %751 = vmatprep.subr.bf16.mxu0 %v393
    %752 = vmatpush1.bf16.msra.mxu0 %v392
    %753 = vmatprep.subr.bf16.mxu0 %v378
    %754 = vmatpush1.bf16.msra.mxu0 %v377
    %755 = vmatprep.subr.bf16.mxu0 %v363
    %756 = vmatpush1.bf16.msra.mxu0 %v362
    %757 = vmatprep.subr.bf16.mxu0 0
    %758 = vmatpush2.bf16.msra.mxu0 0
    %759 = vmatprep.subr.bf16.mxu0 0
    %760 = vmatpush2.bf16.msra.mxu0 0
    %761 = vmatprep.subr.bf16.mxu0 0
    %762 = vmatpush2.bf16.msra.mxu0 0
    %763 = vmatprep.subr.bf16.mxu0 0
    %764 = vmatpush2.bf16.msra.mxu0 0
    %765 = vmatprep.subr.bf16.mxu0 0
    %766 = vmatpush2.bf16.msra.mxu0 0
    %767 = vmatprep.subr.bf16.mxu0 0
    %768 = vmatpush2.bf16.msra.mxu0 0
    %769 = vmatprep.subr.bf16.mxu0 0
    %770 = vmatpush2.bf16.msra.mxu0 0
    %771 = vmatprep.subr.bf16.mxu0 0
    %772 = vmatpush2.bf16.msra.mxu0 0
    %773 = vmatprep.mubr.bf16.mxu0 0
    %774 = vmatmul.mubr.bf16.gmra.mxu0 %v570
    %v775 = vpop.f32.mrf.mxu0
    %v776 = vadd.f32 %v520, %v775
    %v777 = vpop.f32.mrf.mxu0
    %v778 = vadd.f32 %v524, %v777
    %v779 = vpop.f32.mrf.mxu0
    %v780 = vpop.f32.mrf.mxu0
    %781 = vdwg.mxu0
    %782 = vmatprep.subr.bf16.mxu0 0
    %783 = vmatpush1.bf16.msra.mxu0 0
    %784 = vmatprep.subr.bf16.mxu0 0
    %785 = vmatpush1.bf16.msra.mxu0 0
    %786 = vmatprep.subr.bf16.mxu0 0
    %787 = vmatpush1.bf16.msra.mxu0 0
    %788 = vmatprep.subr.bf16.mxu0 %v601
    %789 = vmatpush1.bf16.msra.mxu0 %v598
    %790 = vmatprep.subr.bf16.mxu0 %v410
    %791 = vmatpush1.bf16.msra.mxu0 %v409
    %792 = vmatprep.subr.bf16.mxu0 %v395
    %793 = vmatpush1.bf16.msra.mxu0 %v394
    %794 = vmatprep.subr.bf16.mxu0 %v380
    %795 = vmatpush1.bf16.msra.mxu0 %v379
    %796 = vmatprep.subr.bf16.mxu0 %v365
    %797 = vmatpush1.bf16.msra.mxu0 %v364
    %798 = vmatprep.subr.bf16.mxu0 0
    %799 = vmatpush2.bf16.msra.mxu0 0
    %800 = vmatprep.subr.bf16.mxu0 0
    %801 = vmatpush2.bf16.msra.mxu0 0
    %802 = vmatprep.subr.bf16.mxu0 0
    %803 = vmatpush2.bf16.msra.mxu0 0
    %804 = vmatprep.subr.bf16.mxu0 0
    %805 = vmatpush2.bf16.msra.mxu0 0
    %806 = vmatprep.subr.bf16.mxu0 0
    %807 = vmatpush2.bf16.msra.mxu0 0
    %808 = vmatprep.subr.bf16.mxu0 0
    %809 = vmatpush2.bf16.msra.mxu0 0
    %810 = vmatprep.subr.bf16.mxu0 0
    %811 = vmatpush2.bf16.msra.mxu0 0
    %812 = vmatprep.subr.bf16.mxu0 0
    %813 = vmatpush2.bf16.msra.mxu0 0
    %814 = vmatprep.mubr.bf16.mxu0 0
    %815 = vmatmul.mubr.bf16.gmra.mxu0 %v570
    %v816 = vpop.f32.mrf.mxu0
    %v817 = vadd.f32 %v528, %v816
    %v818 = vpop.f32.mrf.mxu0
    %v819 = vadd.f32 %v532, %v818
    %v820 = vpop.f32.mrf.mxu0
    %v821 = vpop.f32.mrf.mxu0
    %822 = vdwg.mxu0
    %823 = vmatprep.subr.bf16.mxu0 0
    %824 = vmatpush1.bf16.msra.mxu0 0
    %825 = vmatprep.subr.bf16.mxu0 0
    %826 = vmatpush1.bf16.msra.mxu0 0
    %827 = vmatprep.subr.bf16.mxu0 0
    %828 = vmatpush1.bf16.msra.mxu0 0
    %829 = vmatprep.subr.bf16.mxu0 %v607
    %830 = vmatpush1.bf16.msra.mxu0 %v604
    %831 = vmatprep.subr.bf16.mxu0 %v412
    %832 = vmatpush1.bf16.msra.mxu0 %v411
    %833 = vmatprep.subr.bf16.mxu0 %v397
    %834 = vmatpush1.bf16.msra.mxu0 %v396
    %835 = vmatprep.subr.bf16.mxu0 %v382
    %836 = vmatpush1.bf16.msra.mxu0 %v381
    %837 = vmatprep.subr.bf16.mxu0 %v367
    %838 = vmatpush1.bf16.msra.mxu0 %v366
    %839 = vmatprep.subr.bf16.mxu0 0
    %840 = vmatpush2.bf16.msra.mxu0 0
    %841 = vmatprep.subr.bf16.mxu0 0
    %842 = vmatpush2.bf16.msra.mxu0 0
    %843 = vmatprep.subr.bf16.mxu0 0
    %844 = vmatpush2.bf16.msra.mxu0 0
    %845 = vmatprep.subr.bf16.mxu0 0
    %846 = vmatpush2.bf16.msra.mxu0 0
    %847 = vmatprep.subr.bf16.mxu0 0
    %848 = vmatpush2.bf16.msra.mxu0 0
    %849 = vmatprep.subr.bf16.mxu0 0
    %850 = vmatpush2.bf16.msra.mxu0 0
    %851 = vmatprep.subr.bf16.mxu0 0
    %852 = vmatpush2.bf16.msra.mxu0 0
    %853 = vmatprep.subr.bf16.mxu0 0
    %854 = vmatpush2.bf16.msra.mxu0 0
    %855 = vmatprep.mubr.bf16.mxu0 0
    %856 = vmatmul.mubr.bf16.gmra.mxu0 %v570
    %v857 = vpop.f32.mrf.mxu0
    %v858 = vadd.f32 %v536, %v857
    %v859 = vpop.f32.mrf.mxu0
    %v860 = vadd.f32 %v540, %v859
    %v861 = vpop.f32.mrf.mxu0
    %v862 = vpop.f32.mrf.mxu0
    %863 = vdwg.mxu0
    %864 = vmatprep.subr.bf16.mxu0 0
    %865 = vmatpush1.bf16.msra.mxu0 0
    %866 = vmatprep.subr.bf16.mxu0 0
    %867 = vmatpush1.bf16.msra.mxu0 0
    %868 = vmatprep.subr.bf16.mxu0 0
    %869 = vmatpush1.bf16.msra.mxu0 0
    %870 = vmatprep.subr.bf16.mxu0 %v613
    %871 = vmatpush1.bf16.msra.mxu0 %v610
    %872 = vmatprep.subr.bf16.mxu0 %v414
    %873 = vmatpush1.bf16.msra.mxu0 %v413
    %874 = vmatprep.subr.bf16.mxu0 %v399
    %875 = vmatpush1.bf16.msra.mxu0 %v398
    %876 = vmatprep.subr.bf16.mxu0 %v384
    %877 = vmatpush1.bf16.msra.mxu0 %v383
    %878 = vmatprep.subr.bf16.mxu0 %v369
    %879 = vmatpush1.bf16.msra.mxu0 %v368
    %880 = vmatprep.subr.bf16.mxu0 0
    %881 = vmatpush2.bf16.msra.mxu0 0
    %882 = vmatprep.subr.bf16.mxu0 0
    %883 = vmatpush2.bf16.msra.mxu0 0
    %884 = vmatprep.subr.bf16.mxu0 0
    %885 = vmatpush2.bf16.msra.mxu0 0
    %886 = vmatprep.subr.bf16.mxu0 0
    %887 = vmatpush2.bf16.msra.mxu0 0
    %888 = vmatprep.subr.bf16.mxu0 0
    %889 = vmatpush2.bf16.msra.mxu0 0
    %890 = vmatprep.subr.bf16.mxu0 0
    %891 = vmatpush2.bf16.msra.mxu0 0
    %892 = vmatprep.subr.bf16.mxu0 0
    %893 = vmatpush2.bf16.msra.mxu0 0
    %894 = vmatprep.subr.bf16.mxu0 0
    %895 = vmatpush2.bf16.msra.mxu0 0
    %896 = vmatprep.mubr.bf16.mxu0 0
    %897 = vmatmul.mubr.bf16.gmra.mxu0 %v570
    %v898 = vpop.f32.mrf.mxu0
    %v899 = vadd.f32 %v544, %v898
    %v900 = vpop.f32.mrf.mxu0
    %v901 = vadd.f32 %v548, %v900
    %v902 = vpop.f32.mrf.mxu0
    %v903 = vpop.f32.mrf.mxu0
    %904 = vdwg.mxu0
    %905 = vmatprep.subr.bf16.mxu0 0
    %906 = vmatpush1.bf16.msra.mxu0 0
    %907 = vmatprep.subr.bf16.mxu0 0
    %908 = vmatpush1.bf16.msra.mxu0 0
    %909 = vmatprep.subr.bf16.mxu0 0
    %910 = vmatpush1.bf16.msra.mxu0 0
    %911 = vmatprep.subr.bf16.mxu0 0
    %912 = vmatpush1.bf16.msra.mxu0 %v616
    %913 = vmatprep.subr.bf16.mxu0 0
    %914 = vmatpush1.bf16.msra.mxu0 %v415
    %915 = vmatprep.subr.bf16.mxu0 0
    %916 = vmatpush1.bf16.msra.mxu0 %v400
    %917 = vmatprep.subr.bf16.mxu0 0
    %918 = vmatpush1.bf16.msra.mxu0 %v385
    %919 = vmatprep.subr.bf16.mxu0 0
    %920 = vmatpush1.bf16.msra.mxu0 %v370
    %921 = vmatprep.subr.bf16.mxu0 0
    %922 = vmatpush2.bf16.msra.mxu0 0
    %923 = vmatprep.subr.bf16.mxu0 0
    %924 = vmatpush2.bf16.msra.mxu0 0
    %925 = vmatprep.subr.bf16.mxu0 0
    %926 = vmatpush2.bf16.msra.mxu0 0
    %927 = vmatprep.subr.bf16.mxu0 0
    %928 = vmatpush2.bf16.msra.mxu0 0
    %929 = vmatprep.subr.bf16.mxu0 0
    %930 = vmatpush2.bf16.msra.mxu0 0
    %931 = vmatprep.subr.bf16.mxu0 0
    %932 = vmatpush2.bf16.msra.mxu0 0
    %933 = vmatprep.subr.bf16.mxu0 0
    %934 = vmatpush2.bf16.msra.mxu0 0
    %935 = vmatprep.subr.bf16.mxu0 0
    %936 = vmatpush2.bf16.msra.mxu0 0
    %937 = vmatprep.mubr.bf16.mxu0 0
    %938 = vmatmul.mubr.bf16.gmra.mxu0 %v570
    %v939 = vpop.f32.mrf.mxu0
    %v940 = vadd.f32 %v552, %v939
    %v941 = vpop.f32.mrf.mxu0
    %v942 = vpop.f32.mrf.mxu0
    %v943 = vpop.f32.mrf.mxu0
    %944 = vdwg.mxu0
    %v960 = vcombine.low %v653, %v655
    %v961 = vcombine.low %v694, %v696
    %v962 = vcombine.low %v735, %v737
    %v963 = vcombine.low %v776, %v778
    %v965 = vunpack.c.l.s4 1966171168
    %v966 = vunpack.c.0.s8 %v965
    %v967 = vlaneseq
    %v968 = vshrl.u32 %v967, 7
    %v969 = vsub.s32 %v966, %v968
    %v970 = vrot.slane %v960, %v969
    %v972 = vunpack.c.l.s4 1966171168
    %v973 = vunpack.c.0.s8 %v972
    %v974 = vlaneseq
    %v975 = vshrl.u32 %v974, 7
    %v976 = vsub.s32 %v973, %v975
    %v977 = vrot.slane %v961, %v976
    %v979 = vunpack.c.l.s4 1966171168
    %v980 = vunpack.c.0.s8 %v979
    %v981 = vlaneseq
    %v982 = vshrl.u32 %v981, 7
    %v983 = vsub.s32 %v980, %v982
    %v984 = vrot.slane %v962, %v983
    %v986 = vunpack.c.l.s4 1966171168
    %v987 = vunpack.c.0.s8 %v986
    %v988 = vlaneseq
    %v989 = vshrl.u32 %v988, 7
    %v990 = vsub.s32 %v987, %v989
    %v991 = vrot.slane %v963, %v990
    %v992 = vcombine.low %v970, %v977
    %v993 = vcombine.low %v984, %v991
    %v995 = vunpack.c.l.s4 1966171168
    %v996 = vunpack.c.0.s8 %v995
    %v997 = vlaneseq
    %v998 = vshrl.u32 %v997, 7
    %v999 = vsub.s32 %v996, %v998
    %v1000 = vrot.slane %v992, %v999
    %v1002 = vunpack.c.l.s4 1966171168
    %v1003 = vunpack.c.0.s8 %v1002
    %v1004 = vlaneseq
    %v1005 = vshrl.u32 %v1004, 7
    %v1006 = vsub.s32 %v1003, %v1005
    %v1007 = vrot.slane %v993, %v1006
    %v1008 = vcombine.low %v1000, %v1007
    %v1009 = vcombine.low %v817, %v819
    %v1010 = vcombine.low %v858, %v860
    %v1011 = vcombine.low %v899, %v901
    %v1013 = vunpack.c.l.s4 1966171168
    %v1014 = vunpack.c.0.s8 %v1013
    %v1015 = vlaneseq
    %v1016 = vshrl.u32 %v1015, 7
    %v1017 = vsub.s32 %v1014, %v1016
    %v1018 = vrot.slane %v1009, %v1017
    %v1020 = vunpack.c.l.s4 1966171168
    %v1021 = vunpack.c.0.s8 %v1020
    %v1022 = vlaneseq
    %v1023 = vshrl.u32 %v1022, 7
    %v1024 = vsub.s32 %v1021, %v1023
    %v1025 = vrot.slane %v1010, %v1024
    %v1027 = vunpack.c.l.s4 1966171168
    %v1028 = vunpack.c.0.s8 %v1027
    %v1029 = vlaneseq
    %v1030 = vshrl.u32 %v1029, 7
    %v1031 = vsub.s32 %v1028, %v1030
    %v1032 = vrot.slane %v1011, %v1031
    %v1034 = vunpack.c.l.s4 1966171168
    %v1035 = vunpack.c.0.s8 %v1034
    %v1036 = vlaneseq
    %v1037 = vshrl.u32 %v1036, 7
    %v1038 = vsub.s32 %v1035, %v1037
    %v1039 = vrot.slane %v940, %v1038
    %v1040 = vcombine.low %v1018, %v1025
    %v1041 = vcombine.low %v1032, %v1039
    %v1043 = vunpack.c.l.s4 1966171168
    %v1044 = vunpack.c.0.s8 %v1043
    %v1045 = vlaneseq
    %v1046 = vshrl.u32 %v1045, 7
    %v1047 = vsub.s32 %v1044, %v1046
    %v1048 = vrot.slane %v1040, %v1047
    %v1050 = vunpack.c.l.s4 1966171168
    %v1051 = vunpack.c.0.s8 %v1050
    %v1052 = vlaneseq
    %v1053 = vshrl.u32 %v1052, 7
    %v1054 = vsub.s32 %v1051, %v1053
    %v1055 = vrot.slane %v1041, %v1054
    %v1056 = vcombine.low %v1048, %v1055
    %1059 = vst [vmem:[#allocation7] sm:$0xff] %v1008
    %v1060 = vlaneseq
    %vm1061 = vcmp.ge.s32.totalorder %v1060, 0
    %vm1062 = vcmp.lt.s32.totalorder %v1060, 800
    %vm1063 = vmand %vm1061, %vm1062
    %1064 = vst.msk [vmem:[#allocation7 + $0x8] sm:$0x7f] %vm1063, %v1056
    // Predicated region
    $region22: #{conv2d_1x1.1} parent=1 // pred_check
      _
    $region23: #{conv2d_1x1.1} parent=1 // pred_check_branch
      %1066 = sbr.rel (0) target = $region25
    $region24: #{conv2d_1x1.1} parent=1 // pred_region
      %s1068 = ssub.s32 240, 240
      %1069 = vsyncadd [#allocation4], %s1068
      %s1071 = sshll.u32 [#allocation7], 4
      %s1072 = int_to_ptr.vmem [resolvable:$true] %s1071
      %1074 = dma.vmem_to_hbm [thread:$0]  %s1072, 240, %s3, [#allocation4]
    $region25: #{conv2d_1x1.1} parent=1 // pred_fallthru
      _
    // Predicated region
    $region26: #{conv2d_1x1.1} parent=1 // pred_check
      _
    $region27: #{conv2d_1x1.1} parent=1 // pred_check_branch
      %1076 = sbr.rel (0) target = $region29
    $region28: #{conv2d_1x1.1} parent=1 // pred_region
      %1077 = dma.done [#allocation4], 240
    $region29: #{conv2d_1x1.1} parent=1 // pred_fallthru
      _
    %1078 = vsyncpa [#allocation3], 1
    %1079 = vsyncpa [#allocation6], 1
    %1080 = vsyncpa [#allocation4], 1

</llo_original>
